<compile_context>
chip_gen: v7x
topology: tpu7x:2x2x1
jax: 0.10.0
libtpu: 0.0.40
codegen_flags: <defaults>
</compile_context>

<pallas_src>
import functools

import jax
import jax.numpy as jnp
from jax.experimental import pallas as pl
from jax.experimental.pallas import tpu as pltpu


def _round_up(n, m):
    return (n + m - 1) // m * m


# ----------------------------- fused Pallas kernel -----------------------------

def _fused_ensemble_kernel(x_stack_ref, pooled_ref, w_ref, b_ref, scale_ref,
                           out_ref, *, batch, n_frames, img_rows, clip_dim,
                           emb_dim, feat_dim, hidden_dim, n_classnames,
                           n_rnn_classes, off_txt, off_ih, off_hh, off_fc):
    f32 = jnp.float32
    bf16 = jnp.bfloat16
    B, T = batch, n_frames

    # --- fused CLIP-image + MobileNet backbone: one bf16 K=img_rows MXU matmul ---
    w_bb = w_ref[0:img_rows, 0:clip_dim + feat_dim]                      # [K, D+F] bf16
    bb = jnp.dot(x_stack_ref[...], w_bb, preferred_element_type=f32)     # [B+T*B, D+F]
    bb = bb + b_ref[0:1, 0:clip_dim + feat_dim]                          # b_img | b_frame

    img_feats = bb[0:B, 0:clip_dim]                                      # [B, D]
    frame_feats = jnp.maximum(                                           # [T*B, F] (t-major)
        bb[B:B + T * B, clip_dim:clip_dim + feat_dim], 0.0)

    # --- CLIP text projection (token mean-pool was hoisted to the wrapper) ---
    txt_feats = jnp.dot(pooled_ref[...],
                        w_ref[off_txt:off_txt + emb_dim, 0:clip_dim],
                        preferred_element_type=f32) + b_ref[1:2, 0:clip_dim]   # [C, D]

    # --- L2 normalize + scaled cosine similarity (logits_per_image) ---
    img_n = img_feats * jax.lax.rsqrt(
        jnp.sum(img_feats * img_feats, axis=-1, keepdims=True) + 1e-12)
    txt_n = txt_feats * jax.lax.rsqrt(
        jnp.sum(txt_feats * txt_feats, axis=-1, keepdims=True) + 1e-12)
    clip_logits = scale_ref[0, 0] * jax.lax.dot_general(
        img_n.astype(bf16), txt_n.astype(bf16),
        (((1,), (1,)), ((), ())), preferred_element_type=f32)            # [B, C]

    # --- RNN input projection hoisted out of the recurrence: one batched matmul ---
    xih = jnp.dot(frame_feats.astype(bf16),
                  w_ref[off_ih:off_ih + feat_dim, 0:hidden_dim],
                  preferred_element_type=f32) + b_ref[2:3, 0:hidden_dim]  # [T*B, H]

    # --- recurrence; t-major rows make each step's slice a static contiguous block ---
    # TODO(synk): keep W_hh MXU-resident across steps with pltpu.matmul_push_rhs /
    # matmul_acc_lhs / matmul_pop; bf16 W_hh already halves the per-step weight push.
    w_hh = w_ref[off_hh:off_hh + hidden_dim, 0:hidden_dim]               # [H, H] bf16
    h = jnp.zeros((B, hidden_dim), f32)
    for t in range(T):  # tiny T: statically unrolled, one MXU push + one tanh per step
        h = jnp.tanh(xih[t * B:(t + 1) * B, :] +
                     jnp.dot(h.astype(bf16), w_hh, preferred_element_type=f32))

    # --- RNN classifier FC ---
    rnn_logits = jnp.dot(h.astype(bf16),
                         w_ref[off_fc:off_fc + hidden_dim, 0:n_rnn_classes],
                         preferred_element_type=f32) + b_ref[3:4, 0:n_rnn_classes]

    # --- merged output == torch.cat((logits_per_image, rnn_logits), dim=1) ---
    out_ref[...] = jnp.concatenate([clip_logits, rnn_logits], axis=1)


# ----------------------------- params / packing --------------------------------

def init_params(key, *, img_dim, frame_dim, vocab, emb_dim, clip_dim,
                feat_dim, hidden_dim, n_rnn_classes):
    """Frozen stand-in weights, pre-packed into one bf16 weight slab + one f32 bias slab."""
    assert img_dim == frame_dim, "backbone RHS fusion assumes shared pixel dim"
    ks = jax.random.split(key, 10)
    s = 0.05
    f32 = jnp.float32

    # TODO(synk): the pretrained CLIP transformer towers and the MobileNetV3 conv stack
    # are opaque submodules in the reference module; they are replaced by compact frozen
    # projections so the matmul/recurrence/similarity hot paths stay inside Pallas.
    w_img = s * jax.random.normal(ks[0], (img_dim, clip_dim), f32)
    b_img = s * jax.random.normal(ks[1], (clip_dim,), f32)
    tok_emb = s * jax.random.normal(ks[2], (vocab, emb_dim), f32)
    w_txt = s * jax.random.normal(ks[3], (emb_dim, clip_dim), f32)
    b_txt = s * jax.random.normal(ks[4], (clip_dim,), f32)
    w_frame = s * jax.random.normal(ks[5], (frame_dim, feat_dim), f32)
    b_frame = s * jax.random.normal(ks[6], (feat_dim,), f32)
    w_ih = s * jax.random.normal(ks[7], (feat_dim, hidden_dim), f32)
    w_hh = s * jax.random.normal(ks[8], (hidden_dim, hidden_dim), f32)
    b_h = jnp.zeros((hidden_dim,), f32)          # folds torch's b_ih + b_hh at init
    w_fc = s * jax.random.normal(ks[9], (hidden_dim, n_rnn_classes), f32)
    b_fc = jnp.zeros((n_rnn_classes,), f32)

    width = 128  # lane-padded slab width
    # fused backbone RHS: [img_dim, clip_dim + feat_dim]
    w_backbone = jnp.concatenate([w_img, w_frame], axis=1)
    sections = [w_backbone, w_txt, w_ih, w_hh, w_fc]
    offs, cur = [], 0
    for sec in sections:                         # 16-row alignment (bf16 sublane pack)
        offs.append(cur)
        cur += _round_up(sec.shape[0], 16)
    total_rows = _round_up(cur, 16)
    w_slab = jnp.zeros((total_rows, width), f32)
    for off, sec in zip(offs, sections):
        w_slab = w_slab.at[off:off + sec.shape[0], 0:sec.shape[1]].set(sec)
    w_slab = w_slab.astype(jnp.bfloat16)

    b_slab = jnp.zeros((8, width), f32)
    b_slab = b_slab.at[0, 0:clip_dim].set(b_img)
    b_slab = b_slab.at[0, clip_dim:clip_dim + feat_dim].set(b_frame)
    b_slab = b_slab.at[1, 0:clip_dim].set(b_txt)
    b_slab = b_slab.at[2, 0:hidden_dim].set(b_h)
    b_slab = b_slab.at[3, 0:n_rnn_classes].set(b_fc)

    params = {
        "tok_emb": tok_emb,
        "w_slab": w_slab,
        "b_slab": b_slab,
        "logit_scale": jnp.full((1, 1), 1.0 / 0.07, f32),   # CLIP logit_scale.exp()
    }
    meta = dict(img_rows=img_dim, clip_dim=clip_dim, emb_dim=emb_dim,
                feat_dim=feat_dim, hidden_dim=hidden_dim,
                n_rnn_classes=n_rnn_classes,
                off_txt=offs[1], off_ih=offs[2], off_hh=offs[3], off_fc=offs[4])
    return params, meta


# ----------------------------- forward ------------------------------------------

def make_ensemble_forward(meta):
    def ensemble_forward(params, frames, image, text_tokens):
        """frames: [B,T,C,H,W], image: [B,C,H,W],
        text_tokens: [n_classnames, 77] int32 (stand-in for clip.tokenize)."""
        B = image.shape[0]
        T = frames.shape[1]
        C, L = text_tokens.shape
        nc = meta["n_rnn_classes"]

        # glue: one stacked bf16 activation DMA; image rows first, frame rows t-major
        x_img = image.reshape(B, -1)
        x_frames = frames.transpose(1, 0, 2, 3, 4).reshape(T * B, -1)
        x_stack = jnp.concatenate([x_img, x_frames], axis=0).astype(jnp.bfloat16)

        # glue: hoisted text-tower token mean-pool -> tiny [C, E] kernel input
        pooled = jnp.take(params["tok_emb"], text_tokens.reshape(-1), axis=0)
        pooled = pooled.reshape(C, L, -1).mean(axis=1).astype(jnp.bfloat16)

        kernel = functools.partial(
            _fused_ensemble_kernel, batch=B, n_frames=T,
            img_rows=meta["img_rows"], clip_dim=meta["clip_dim"],
            emb_dim=meta["emb_dim"], feat_dim=meta["feat_dim"],
            hidden_dim=meta["hidden_dim"], n_classnames=C, n_rnn_classes=nc,
            off_txt=meta["off_txt"], off_ih=meta["off_ih"],
            off_hh=meta["off_hh"], off_fc=meta["off_fc"])

        vmem = pl.BlockSpec(memory_space=pltpu.MemorySpace.VMEM)
        smem = pl.BlockSpec(memory_space=pltpu.MemorySpace.SMEM)
        # TODO(synk): at real CLIP/MobileNet dims, add a grid over B*T / feature tiles
        # (lane-dense >=512 blocks) and set vmem_limit_bytes; on v7x, split the CLIP and
        # RNN heads across the two TensorCores.
        return pl.pallas_call(
            kernel,
            out_shape=jax.ShapeDtypeStruct((B, C + nc), jnp.float32),
            in_specs=[vmem, vmem, vmem, vmem, smem],
            out_specs=vmem,
        )(x_stack, pooled, params["w_slab"], params["b_slab"], params["logit_scale"])

    return ensemble_forward


# ----------------------------- pure-JAX reference --------------------------------

def reference_forward(params, meta, frames, image, text_tokens):
    f32, bf16 = jnp.float32, jnp.bfloat16
    B = image.shape[0]
    T = frames.shape[1]
    C, L = text_tokens.shape
    D, E = meta["clip_dim"], meta["emb_dim"]
    F, H, NC = meta["feat_dim"], meta["hidden_dim"], meta["n_rnn_classes"]
    w = params["w_slab"].astype(f32)
    b = params["b_slab"]
    w_img = w[0:meta["img_rows"], 0:D]
    w_frm = w[0:meta["img_rows"], D:D + F]
    w_txt = w[meta["off_txt"]:meta["off_txt"] + E, 0:D]
    w_ih = w[meta["off_ih"]:meta["off_ih"] + F, 0:H]
    w_hh = w[meta["off_hh"]:meta["off_hh"] + H, 0:H]
    w_fc = w[meta["off_fc"]:meta["off_fc"] + H, 0:NC]

    x_img = image.reshape(B, -1).astype(bf16).astype(f32)
    img_feats = x_img @ w_img + b[0, 0:D]
    pooled = jnp.take(params["tok_emb"], text_tokens.reshape(-1), axis=0)
    pooled = pooled.reshape(C, L, -1).mean(axis=1)
    txt_feats = pooled @ w_txt + b[1, 0:D]
    img_n = img_feats / jnp.linalg.norm(img_feats, axis=-1, keepdims=True)
    txt_n = txt_feats / jnp.linalg.norm(txt_feats, axis=-1, keepdims=True)
    clip_logits = params["logit_scale"][0, 0] * (img_n @ txt_n.T)

    x_f = frames.reshape(B * T, -1).astype(bf16).astype(f32)
    feats = jnp.maximum(x_f @ w_frm + b[0, D:D + F], 0.0)
    xih = (feats @ w_ih + b[2, 0:H]).reshape(B, T, H)
    h = jnp.zeros((B, H), f32)
    for t in range(T):
        h = jnp.tanh(xih[:, t, :] + h @ w_hh)
    rnn_logits = h @ w_fc + b[3, 0:NC]
    return jnp.concatenate([clip_logits, rnn_logits], axis=1)


# ----------------------------- main ----------------------------------------------

if __name__ == "__main__":
    B, T = 2, 8                 # batch, frames per clip
    C_IN, H, W = 3, 16, 16      # image channels / spatial
    N_CLASSNAMES = 4            # len(classname) -> CLIP logits_per_image columns
    CTX_LEN, VOCAB = 77, 128    # clip.tokenize context length / toy vocab
    EMB, CLIP_D = 32, 64        # text embedding dim, CLIP joint dim
    FEAT, HID = 32, 32          # per-frame feature dim, RNN hidden dim
    N_RNN_CLASSES = 4           # mobilenet_rnn_model output classes

    key = jax.random.PRNGKey(0)
    k_img, k_frm, k_tok, k_par = jax.random.split(key, 4)

    image = jax.random.normal(k_img, (B, C_IN, H, W), jnp.float32)
    frames = jax.random.normal(k_frm, (B, T, C_IN, H, W), jnp.float32)
    text_tokens = jax.random.randint(k_tok, (N_CLASSNAMES, CTX_LEN), 0, VOCAB, jnp.int32)

    params, meta = init_params(
        k_par,
        img_dim=C_IN * H * W, frame_dim=C_IN * H * W,
        vocab=VOCAB, emb_dim=EMB, clip_dim=CLIP_D,
        feat_dim=FEAT, hidden_dim=HID, n_rnn_classes=N_RNN_CLASSES)

    fwd = jax.jit(make_ensemble_forward(meta))
    out = jax.block_until_ready(fwd(params, frames, image, text_tokens))

    assert out.shape == (B, N_CLASSNAMES + N_RNN_CLASSES), out.shape
    assert out.dtype == jnp.float32
    assert bool(jnp.all(jnp.isfinite(out)))

    ref = reference_forward(params, meta, frames, image, text_tokens)
    assert bool(jnp.allclose(out, ref, atol=5e-2, rtol=5e-2)), (out, ref)

    print("KERNEL_OK")
</pallas_src>

<mosaic_0001>
module attributes {stable_mosaic.version = 11 : i64} {
  func.func @_fused_ensemble_kernel(%arg0: memref<18x768xbf16, #tpu.memory_space<vmem>>, %arg1: memref<4x32xbf16, #tpu.memory_space<vmem>>, %arg2: memref<896x128xbf16, #tpu.memory_space<vmem>>, %arg3: memref<8x128xf32, #tpu.memory_space<vmem>>, %arg4: memref<1x1xf32, #tpu.memory_space<smem>>, %arg5: memref<2x8xf32, #tpu.memory_space<vmem>>) attributes {dimension_semantics = [], scalar_prefetch = 0 : i64, scratch_operands = 0 : i64, tpu.core_type = #tpu.core_type<tc>} {
    %c0 = arith.constant 0 : index
    %c0_0 = arith.constant 0 : index
    %0 = vector.load %arg2[%c0, %c0_0] : memref<896x128xbf16, #tpu.memory_space<vmem>>, vector<768x96xbf16>
    %c0_1 = arith.constant 0 : index
    %c0_2 = arith.constant 0 : index
    %1 = vector.load %arg0[%c0_1, %c0_2] : memref<18x768xbf16, #tpu.memory_space<vmem>>, vector<18x768xbf16>
    %cst = arith.constant dense<0.000000e+00> : vector<18x96xf32>
    %2 = tpu.matmul %1, %0, %cst {dimension_numbers = #tpu.dot_dimension_numbers<[1], [0], [0], [1], [0, 0, 1, 1], [], []>} : vector<18x768xbf16>, vector<768x96xbf16>, vector<18x96xf32> -> vector<18x96xf32>
    %c0_3 = arith.constant 0 : index
    %c0_4 = arith.constant 0 : index
    %3 = vector.load %arg3[%c0_3, %c0_4] : memref<8x128xf32, #tpu.memory_space<vmem>>, vector<1x96xf32>
    %4 = vector.broadcast %3 : vector<1x96xf32> to vector<18x96xf32>
    %5 = arith.addf %2, %4 : vector<18x96xf32>
    %6 = vector.extract_strided_slice %5 {offsets = [0, 0], sizes = [2, 64], strides = [1, 1]} : vector<18x96xf32> to vector<2x64xf32>
    %7 = vector.extract_strided_slice %5 {offsets = [2, 64], sizes = [16, 32], strides = [1, 1]} : vector<18x96xf32> to vector<16x32xf32>
    %cst_5 = arith.constant 0.000000e+00 : f32
    %8 = vector.broadcast %cst_5 : f32 to vector<16x32xf32>
    %9 = arith.maximumf %7, %8 : vector<16x32xf32>
    %c0_6 = arith.constant 0 : index
    %c0_7 = arith.constant 0 : index
    %10 = vector.load %arg1[%c0_6, %c0_7] : memref<4x32xbf16, #tpu.memory_space<vmem>>, vector<4x32xbf16>
    %c768 = arith.constant 768 : index
    %c0_8 = arith.constant 0 : index
    %11 = vector.load %arg2[%c768, %c0_8] : memref<896x128xbf16, #tpu.memory_space<vmem>>, vector<32x64xbf16>
    %cst_9 = arith.constant dense<0.000000e+00> : vector<4x64xf32>
    %12 = tpu.matmul %10, %11, %cst_9 {dimension_numbers = #tpu.dot_dimension_numbers<[1], [0], [0], [1], [0, 0, 1, 1], [], []>} : vector<4x32xbf16>, vector<32x64xbf16>, vector<4x64xf32> -> vector<4x64xf32>
    %c1 = arith.constant 1 : index
    %c0_10 = arith.constant 0 : index
    %13 = vector.load %arg3[%c1, %c0_10] : memref<8x128xf32, #tpu.memory_space<vmem>>, vector<1x64xf32>
    %14 = vector.broadcast %13 : vector<1x64xf32> to vector<4x64xf32>
    %15 = arith.addf %12, %14 : vector<4x64xf32>
    %16 = arith.mulf %6, %6 : vector<2x64xf32>
    %cst_11 = arith.constant dense<0.000000e+00> : vector<2xf32>
    %17 = vector.multi_reduction <add>, %16, %cst_11 [1] : vector<2x64xf32> to vector<2xf32>
    %18 = vector.shape_cast %17 : vector<2xf32> to vector<2x1xf32>
    %cst_12 = arith.constant 9.99999996E-13 : f32
    %19 = vector.broadcast %cst_12 : f32 to vector<2x1xf32>
    %20 = arith.addf %18, %19 : vector<2x1xf32>
    %21 = math.rsqrt %20 : vector<2x1xf32>
    %22 = vector.broadcast %21 : vector<2x1xf32> to vector<2x64xf32>
    %23 = arith.mulf %6, %22 : vector<2x64xf32>
    %24 = arith.mulf %15, %15 : vector<4x64xf32>
    %cst_13 = arith.constant dense<0.000000e+00> : vector<4xf32>
    %25 = vector.multi_reduction <add>, %24, %cst_13 [1] : vector<4x64xf32> to vector<4xf32>
    %26 = vector.shape_cast %25 : vector<4xf32> to vector<4x1xf32>
    %cst_14 = arith.constant 9.99999996E-13 : f32
    %27 = vector.broadcast %cst_14 : f32 to vector<4x1xf32>
    %28 = arith.addf %26, %27 : vector<4x1xf32>
    %29 = math.rsqrt %28 : vector<4x1xf32>
    %30 = vector.broadcast %29 : vector<4x1xf32> to vector<4x64xf32>
    %31 = arith.mulf %15, %30 : vector<4x64xf32>
    %c0_15 = arith.constant 0 : index
    %c0_16 = arith.constant 0 : index
    %32 = memref.load %arg4[%c0_15, %c0_16] : memref<1x1xf32, #tpu.memory_space<smem>>
    %33 = arith.truncf %23 : vector<2x64xf32> to vector<2x64xbf16>
    %34 = arith.truncf %31 : vector<4x64xf32> to vector<4x64xbf16>
    %cst_17 = arith.constant dense<0.000000e+00> : vector<2x4xf32>
    %35 = tpu.matmul %33, %34, %cst_17 {dimension_numbers = #tpu.dot_dimension_numbers<[1], [1], [0], [0], [0, 0, 1, 0], [], []>} : vector<2x64xbf16>, vector<4x64xbf16>, vector<2x4xf32> -> vector<2x4xf32>
    %36 = vector.broadcast %32 : f32 to vector<2x4xf32>
    %37 = arith.mulf %36, %35 : vector<2x4xf32>
    %38 = arith.truncf %9 : vector<16x32xf32> to vector<16x32xbf16>
    %c800 = arith.constant 800 : index
    %c0_18 = arith.constant 0 : index
    %39 = vector.load %arg2[%c800, %c0_18] : memref<896x128xbf16, #tpu.memory_space<vmem>>, vector<32x32xbf16>
    %cst_19 = arith.constant dense<0.000000e+00> : vector<16x32xf32>
    %40 = tpu.matmul %38, %39, %cst_19 {dimension_numbers = #tpu.dot_dimension_numbers<[1], [0], [0], [1], [0, 0, 1, 1], [], []>} : vector<16x32xbf16>, vector<32x32xbf16>, vector<16x32xf32> -> vector<16x32xf32>
    %c2 = arith.constant 2 : index
    %c0_20 = arith.constant 0 : index
    %41 = vector.load %arg3[%c2, %c0_20] : memref<8x128xf32, #tpu.memory_space<vmem>>, vector<1x32xf32>
    %42 = vector.broadcast %41 : vector<1x32xf32> to vector<16x32xf32>
    %43 = arith.addf %40, %42 : vector<16x32xf32>
    %c832 = arith.constant 832 : index
    %c0_21 = arith.constant 0 : index
    %44 = vector.load %arg2[%c832, %c0_21] : memref<896x128xbf16, #tpu.memory_space<vmem>>, vector<32x32xbf16>
    %cst_22 = arith.constant 0.000000e+00 : f32
    %45 = vector.broadcast %cst_22 : f32 to vector<2x32xf32>
    %46 = vector.extract_strided_slice %43 {offsets = [0, 0], sizes = [2, 32], strides = [1, 1]} : vector<16x32xf32> to vector<2x32xf32>
    %47 = arith.truncf %45 : vector<2x32xf32> to vector<2x32xbf16>
    %cst_23 = arith.constant dense<0.000000e+00> : vector<2x32xf32>
    %48 = tpu.matmul %47, %44, %cst_23 {dimension_numbers = #tpu.dot_dimension_numbers<[1], [0], [0], [1], [0, 0, 1, 1], [], []>} : vector<2x32xbf16>, vector<32x32xbf16>, vector<2x32xf32> -> vector<2x32xf32>
    %49 = arith.addf %46, %48 : vector<2x32xf32>
    %50 = math.tanh %49 : vector<2x32xf32>
    %51 = vector.extract_strided_slice %43 {offsets = [2, 0], sizes = [2, 32], strides = [1, 1]} : vector<16x32xf32> to vector<2x32xf32>
    %52 = arith.truncf %50 : vector<2x32xf32> to vector<2x32xbf16>
    %cst_24 = arith.constant dense<0.000000e+00> : vector<2x32xf32>
    %53 = tpu.matmul %52, %44, %cst_24 {dimension_numbers = #tpu.dot_dimension_numbers<[1], [0], [0], [1], [0, 0, 1, 1], [], []>} : vector<2x32xbf16>, vector<32x32xbf16>, vector<2x32xf32> -> vector<2x32xf32>
    %54 = arith.addf %51, %53 : vector<2x32xf32>
    %55 = math.tanh %54 : vector<2x32xf32>
    %56 = vector.extract_strided_slice %43 {offsets = [4, 0], sizes = [2, 32], strides = [1, 1]} : vector<16x32xf32> to vector<2x32xf32>
    %57 = arith.truncf %55 : vector<2x32xf32> to vector<2x32xbf16>
    %cst_25 = arith.constant dense<0.000000e+00> : vector<2x32xf32>
    %58 = tpu.matmul %57, %44, %cst_25 {dimension_numbers = #tpu.dot_dimension_numbers<[1], [0], [0], [1], [0, 0, 1, 1], [], []>} : vector<2x32xbf16>, vector<32x32xbf16>, vector<2x32xf32> -> vector<2x32xf32>
    %59 = arith.addf %56, %58 : vector<2x32xf32>
    %60 = math.tanh %59 : vector<2x32xf32>
    %61 = vector.extract_strided_slice %43 {offsets = [6, 0], sizes = [2, 32], strides = [1, 1]} : vector<16x32xf32> to vector<2x32xf32>
    %62 = arith.truncf %60 : vector<2x32xf32> to vector<2x32xbf16>
    %cst_26 = arith.constant dense<0.000000e+00> : vector<2x32xf32>
    %63 = tpu.matmul %62, %44, %cst_26 {dimension_numbers = #tpu.dot_dimension_numbers<[1], [0], [0], [1], [0, 0, 1, 1], [], []>} : vector<2x32xbf16>, vector<32x32xbf16>, vector<2x32xf32> -> vector<2x32xf32>
    %64 = arith.addf %61, %63 : vector<2x32xf32>
    %65 = math.tanh %64 : vector<2x32xf32>
    %66 = vector.extract_strided_slice %43 {offsets = [8, 0], sizes = [2, 32], strides = [1, 1]} : vector<16x32xf32> to vector<2x32xf32>
    %67 = arith.truncf %65 : vector<2x32xf32> to vector<2x32xbf16>
    %cst_27 = arith.constant dense<0.000000e+00> : vector<2x32xf32>
    %68 = tpu.matmul %67, %44, %cst_27 {dimension_numbers = #tpu.dot_dimension_numbers<[1], [0], [0], [1], [0, 0, 1, 1], [], []>} : vector<2x32xbf16>, vector<32x32xbf16>, vector<2x32xf32> -> vector<2x32xf32>
    %69 = arith.addf %66, %68 : vector<2x32xf32>
    %70 = math.tanh %69 : vector<2x32xf32>
    %71 = vector.extract_strided_slice %43 {offsets = [10, 0], sizes = [2, 32], strides = [1, 1]} : vector<16x32xf32> to vector<2x32xf32>
    %72 = arith.truncf %70 : vector<2x32xf32> to vector<2x32xbf16>
    %cst_28 = arith.constant dense<0.000000e+00> : vector<2x32xf32>
    %73 = tpu.matmul %72, %44, %cst_28 {dimension_numbers = #tpu.dot_dimension_numbers<[1], [0], [0], [1], [0, 0, 1, 1], [], []>} : vector<2x32xbf16>, vector<32x32xbf16>, vector<2x32xf32> -> vector<2x32xf32>
    %74 = arith.addf %71, %73 : vector<2x32xf32>
    %75 = math.tanh %74 : vector<2x32xf32>
    %76 = vector.extract_strided_slice %43 {offsets = [12, 0], sizes = [2, 32], strides = [1, 1]} : vector<16x32xf32> to vector<2x32xf32>
    %77 = arith.truncf %75 : vector<2x32xf32> to vector<2x32xbf16>
    %cst_29 = arith.constant dense<0.000000e+00> : vector<2x32xf32>
    %78 = tpu.matmul %77, %44, %cst_29 {dimension_numbers = #tpu.dot_dimension_numbers<[1], [0], [0], [1], [0, 0, 1, 1], [], []>} : vector<2x32xbf16>, vector<32x32xbf16>, vector<2x32xf32> -> vector<2x32xf32>
    %79 = arith.addf %76, %78 : vector<2x32xf32>
    %80 = math.tanh %79 : vector<2x32xf32>
    %81 = vector.extract_strided_slice %43 {offsets = [14, 0], sizes = [2, 32], strides = [1, 1]} : vector<16x32xf32> to vector<2x32xf32>
    %82 = arith.truncf %80 : vector<2x32xf32> to vector<2x32xbf16>
    %cst_30 = arith.constant dense<0.000000e+00> : vector<2x32xf32>
    %83 = tpu.matmul %82, %44, %cst_30 {dimension_numbers = #tpu.dot_dimension_numbers<[1], [0], [0], [1], [0, 0, 1, 1], [], []>} : vector<2x32xbf16>, vector<32x32xbf16>, vector<2x32xf32> -> vector<2x32xf32>
    %84 = arith.addf %81, %83 : vector<2x32xf32>
    %85 = math.tanh %84 : vector<2x32xf32>
    %86 = arith.truncf %85 : vector<2x32xf32> to vector<2x32xbf16>
    %c864 = arith.constant 864 : index
    %c0_31 = arith.constant 0 : index
    %87 = vector.load %arg2[%c864, %c0_31] : memref<896x128xbf16, #tpu.memory_space<vmem>>, vector<32x4xbf16>
    %cst_32 = arith.constant dense<0.000000e+00> : vector<2x4xf32>
    %88 = tpu.matmul %86, %87, %cst_32 {dimension_numbers = #tpu.dot_dimension_numbers<[1], [0], [0], [1], [0, 0, 1, 1], [], []>} : vector<2x32xbf16>, vector<32x4xbf16>, vector<2x4xf32> -> vector<2x4xf32>
    %c3 = arith.constant 3 : index
    %c0_33 = arith.constant 0 : index
    %89 = vector.load %arg3[%c3, %c0_33] : memref<8x128xf32, #tpu.memory_space<vmem>>, vector<1x4xf32>
    %90 = vector.broadcast %89 : vector<1x4xf32> to vector<2x4xf32>
    %91 = arith.addf %88, %90 : vector<2x4xf32>
    %92 = tpu.concatenate %37, %91 in 1 : vector<2x4xf32>, vector<2x4xf32> -> vector<2x8xf32>
    %c0_34 = arith.constant 0 : index
    %c0_35 = arith.constant 0 : index
    %93 = vector.load %arg5[%c0_34, %c0_35] : memref<2x8xf32, #tpu.memory_space<vmem>>, vector<2x8xf32>
    tpu.vector_store %arg5[%c0_34, %c0_35], %92 {strides = array<i32>} : memref<2x8xf32, #tpu.memory_space<vmem>>, vector<2x8xf32>,
    return
  }
}

</mosaic_0001>

<llo_original>
// kernel: ensemble_forward.1
$region0: #{ensemble_forward.1}
  #allocation0 [shape = 'u32[]', space=smem, size = 0x4, offset = 0x4, fixed_abs, tag = 'smem constant byte address 0x4 - core index']
  #allocation1 [shape = 'u32[144,128]{1,0:T(1,128)}', space=vmem, size = 0x12000, scoped, tag = 'internal scratch']
  #allocation2 [shape = 'f32[1,1]{1,0:T(1,128)S(6)}', space=smem, size = 0x200, scoped, tag = 'scoped memory for ensemble_forward.1']
  %s0 = inlined_call_operand.vmem [shape: bf16[18,768], index: 0, kind: input, shape index: {}]
  %s1 = inlined_call_operand.vmem [shape: bf16[4,32], index: 1, kind: input, shape index: {}]
  %s2 = inlined_call_operand.vmem [shape: bf16[896,128], index: 2, kind: input, shape index: {}]
  %s3 = inlined_call_operand.vmem [shape: f32[8,128], index: 3, kind: input, shape index: {}]
  %s4 = inlined_call_operand.<no memory space> [shape: f32[1,1], index: 4, kind: input, shape index: {}]
  %s5 = inlined_call_operand.hbm [shape: f32[2,8], index: 5, kind: output, shape index: {}]
  %s6 = sld [smem:[#allocation0]]
  $region30: #{ensemble_forward.1} parent=0
    _
  %s8 = ssub.s32 1, %s6
  %s9 = scalar_select 0, %s8, %s6
  %10 = sst [smem:[#allocation2]] %s4
  $region1: #{ensemble_forward.1} parent=0
    #allocation3 [shape = 'u8[1024]{0}', space=vmem, size = 0x400, scoped, tag = 'output window, operand 0, single buffered']
    #allocation4 [shape = 's32[1]{0}', space=sflag, size = 0x4, scoped, tag = 'scoped memory for ensemble_forward.1']
    %11 = vsyncpa [#allocation4], 0
    // Predicated region
    $region2: #{ensemble_forward.1} parent=1 // pred_check
      _
    $region3: #{ensemble_forward.1} parent=1 // pred_check_branch
      %13 = sbr.rel (0) target = $region5
    $region4: #{ensemble_forward.1} parent=1 // pred_region
      _
    $region5: #{ensemble_forward.1} parent=1 // pred_fallthru
      _
    // Predicated region
    $region6: #{ensemble_forward.1} parent=1 // pred_check
      _
    $region7: #{ensemble_forward.1} parent=1 // pred_check_branch
      %15 = sbr.rel (0) target = $region9
    $region8: #{ensemble_forward.1} parent=1 // pred_region
      _
    $region9: #{ensemble_forward.1} parent=1 // pred_fallthru
      _
    // Predicated region
    $region10: #{ensemble_forward.1} parent=1 // pred_check
      _
    $region11: #{ensemble_forward.1} parent=1 // pred_check_branch
      %17 = sbr.rel (0) target = $region13
    $region12: #{ensemble_forward.1} parent=1 // pred_region
      _
    $region13: #{ensemble_forward.1} parent=1 // pred_fallthru
      _
    // Predicated region
    $region14: #{ensemble_forward.1} parent=1 // pred_check
      _
    $region15: #{ensemble_forward.1} parent=1 // pred_check_branch
      %19 = sbr.rel (0) target = $region17
    $region16: #{ensemble_forward.1} parent=1 // pred_region
      _
    $region17: #{ensemble_forward.1} parent=1 // pred_fallthru
      _
    // Predicated region
    $region18: #{ensemble_forward.1} parent=1 // pred_check
      _
    $region19: #{ensemble_forward.1} parent=1 // pred_check_branch
      %21 = sbr.rel (0) target = $region21
    $region20: #{ensemble_forward.1} parent=1 // pred_region
      _
    $region21: #{ensemble_forward.1} parent=1 // pred_fallthru
      _
    %v23 = vld [vmem:[%s2] sm:$0xf]
    %v24 = vld [vmem:[%s2 + $0x4] sm:$0xf]
    %v25 = vld [vmem:[%s2 + $0x8] sm:$0xf]
    %v26 = vld [vmem:[%s2 + $0xc] sm:$0xf]
    %v27 = vld [vmem:[%s2 + $0x10] sm:$0xf]
    %v28 = vld [vmem:[%s2 + $0x14] sm:$0xf]
    %v29 = vld [vmem:[%s2 + $0x18] sm:$0xf]
    %v30 = vld [vmem:[%s2 + $0x1c] sm:$0xf]
    %v31 = vld [vmem:[%s2 + $0x20] sm:$0xf]
    %v32 = vld [vmem:[%s2 + $0x24] sm:$0xf]
    %v33 = vld [vmem:[%s2 + $0x28] sm:$0xf]
    %v34 = vld [vmem:[%s2 + $0x2c] sm:$0xf]
    %v35 = vld [vmem:[%s2 + $0x30] sm:$0xf]
    %v36 = vld [vmem:[%s2 + $0x34] sm:$0xf]
    %v37 = vld [vmem:[%s2 + $0x38] sm:$0xf]
    %v38 = vld [vmem:[%s2 + $0x3c] sm:$0xf]
    %v39 = vld [vmem:[%s2 + $0x40] sm:$0xf]
    %v40 = vld [vmem:[%s2 + $0x44] sm:$0xf]
    %v41 = vld [vmem:[%s2 + $0x48] sm:$0xf]
    %v42 = vld [vmem:[%s2 + $0x4c] sm:$0xf]
    %v43 = vld [vmem:[%s2 + $0x50] sm:$0xf]
    %v44 = vld [vmem:[%s2 + $0x54] sm:$0xf]
    %v45 = vld [vmem:[%s2 + $0x58] sm:$0xf]
    %v46 = vld [vmem:[%s2 + $0x5c] sm:$0xf]
    %v47 = vld [vmem:[%s2 + $0x60] sm:$0xf]
    %v48 = vld [vmem:[%s2 + $0x64] sm:$0xf]
    %v49 = vld [vmem:[%s2 + $0x68] sm:$0xf]
    %v50 = vld [vmem:[%s2 + $0x6c] sm:$0xf]
    %v51 = vld [vmem:[%s2 + $0x70] sm:$0xf]
    %v52 = vld [vmem:[%s2 + $0x74] sm:$0xf]
    %v53 = vld [vmem:[%s2 + $0x78] sm:$0xf]
    %v54 = vld [vmem:[%s2 + $0x7c] sm:$0xf]
    %v55 = vld [vmem:[%s2 + $0x80] sm:$0xf]
    %v56 = vld [vmem:[%s2 + $0x84] sm:$0xf]
    %v57 = vld [vmem:[%s2 + $0x88] sm:$0xf]
    %v58 = vld [vmem:[%s2 + $0x8c] sm:$0xf]
    %v59 = vld [vmem:[%s2 + $0x90] sm:$0xf]
    %v60 = vld [vmem:[%s2 + $0x94] sm:$0xf]
    %v61 = vld [vmem:[%s2 + $0x98] sm:$0xf]
    %v62 = vld [vmem:[%s2 + $0x9c] sm:$0xf]
    %v63 = vld [vmem:[%s2 + $0xa0] sm:$0xf]
    %v64 = vld [vmem:[%s2 + $0xa4] sm:$0xf]
    %v65 = vld [vmem:[%s2 + $0xa8] sm:$0xf]
    %v66 = vld [vmem:[%s2 + $0xac] sm:$0xf]
    %v67 = vld [vmem:[%s2 + $0xb0] sm:$0xf]
    %v68 = vld [vmem:[%s2 + $0xb4] sm:$0xf]
    %v69 = vld [vmem:[%s2 + $0xb8] sm:$0xf]
    %v70 = vld [vmem:[%s2 + $0xbc] sm:$0xf]
    %v71 = vld [vmem:[%s2 + $0xc0] sm:$0xf]
    %v72 = vld [vmem:[%s2 + $0xc4] sm:$0xf]
    %v73 = vld [vmem:[%s2 + $0xc8] sm:$0xf]
    %v74 = vld [vmem:[%s2 + $0xcc] sm:$0xf]
    %v75 = vld [vmem:[%s2 + $0xd0] sm:$0xf]
    %v76 = vld [vmem:[%s2 + $0xd4] sm:$0xf]
    %v77 = vld [vmem:[%s2 + $0xd8] sm:$0xf]
    %v78 = vld [vmem:[%s2 + $0xdc] sm:$0xf]
    %v79 = vld [vmem:[%s2 + $0xe0] sm:$0xf]
    %v80 = vld [vmem:[%s2 + $0xe4] sm:$0xf]
    %v81 = vld [vmem:[%s2 + $0xe8] sm:$0xf]
    %v82 = vld [vmem:[%s2 + $0xec] sm:$0xf]
    %v83 = vld [vmem:[%s2 + $0xf0] sm:$0xf]
    %v84 = vld [vmem:[%s2 + $0xf4] sm:$0xf]
    %v85 = vld [vmem:[%s2 + $0xf8] sm:$0xf]
    %v86 = vld [vmem:[%s2 + $0xfc] sm:$0xf]
    %v87 = vld [vmem:[%s2 + $0x100] sm:$0xf]
    %v88 = vld [vmem:[%s2 + $0x104] sm:$0xf]
    %v89 = vld [vmem:[%s2 + $0x108] sm:$0xf]
    %v90 = vld [vmem:[%s2 + $0x10c] sm:$0xf]
    %v91 = vld [vmem:[%s2 + $0x110] sm:$0xf]
    %v92 = vld [vmem:[%s2 + $0x114] sm:$0xf]
    %v93 = vld [vmem:[%s2 + $0x118] sm:$0xf]
    %v94 = vld [vmem:[%s2 + $0x11c] sm:$0xf]
    %v95 = vld [vmem:[%s2 + $0x120] sm:$0xf]
    %v96 = vld [vmem:[%s2 + $0x124] sm:$0xf]
    %v97 = vld [vmem:[%s2 + $0x128] sm:$0xf]
    %v98 = vld [vmem:[%s2 + $0x12c] sm:$0xf]
    %v99 = vld [vmem:[%s2 + $0x130] sm:$0xf]
    %v100 = vld [vmem:[%s2 + $0x134] sm:$0xf]
    %v101 = vld [vmem:[%s2 + $0x138] sm:$0xf]
    %v102 = vld [vmem:[%s2 + $0x13c] sm:$0xf]
    %v103 = vld [vmem:[%s2 + $0x140] sm:$0xf]
    %v104 = vld [vmem:[%s2 + $0x144] sm:$0xf]
    %v105 = vld [vmem:[%s2 + $0x148] sm:$0xf]
    %v106 = vld [vmem:[%s2 + $0x14c] sm:$0xf]
    %v107 = vld [vmem:[%s2 + $0x150] sm:$0xf]
    %v108 = vld [vmem:[%s2 + $0x154] sm:$0xf]
    %v109 = vld [vmem:[%s2 + $0x158] sm:$0xf]
    %v110 = vld [vmem:[%s2 + $0x15c] sm:$0xf]
    %v111 = vld [vmem:[%s2 + $0x160] sm:$0xf]
    %v112 = vld [vmem:[%s2 + $0x164] sm:$0xf]
    %v113 = vld [vmem:[%s2 + $0x168] sm:$0xf]
    %v114 = vld [vmem:[%s2 + $0x16c] sm:$0xf]
    %v115 = vld [vmem:[%s2 + $0x170] sm:$0xf]
    %v116 = vld [vmem:[%s2 + $0x174] sm:$0xf]
    %v117 = vld [vmem:[%s2 + $0x178] sm:$0xf]
    %v118 = vld [vmem:[%s2 + $0x17c] sm:$0xf]
    %v119 = vld [vmem:[%s0] sm:$0xff]
    %v120 = vld [vmem:[%s0 + $0x8] sm:$0xff]
    %v121 = vld [vmem:[%s0 + $0x10] sm:$0xff]
    %v122 = vld [vmem:[%s0 + $0x18] sm:$0xff]
    %v123 = vld [vmem:[%s0 + $0x20] sm:$0xff]
    %v124 = vld [vmem:[%s0 + $0x28] sm:$0xff]
    %v125 = vld [vmem:[%s0 + $0x30] sm:$0x11]
    %v126 = vld [vmem:[%s0 + $0x38] sm:$0x11]
    %v127 = vld [vmem:[%s0 + $0x40] sm:$0x11]
    %v128 = vld [vmem:[%s3] sm:$0x1]
    %v129 = vlaneseq
    %v130 = vshrl.u32 %v129, 7
    %v131 = vsub.s32 0, %v130
    %v132 = vrot.slane %v128, %v131
    %v142 = vunpack.c.l.b16 %v119
    %v143 = vunpack.c.h.b16 %v119
    %v144 = vunpack.c.l.b16 %v120
    %v145 = vunpack.c.h.b16 %v120
    %v146 = vunpack.c.l.b16 %v121
    %v147 = vunpack.c.h.b16 %v121
    %v148 = vunpack.c.l.b16 %v122
    %v149 = vunpack.c.h.b16 %v122
    %v150 = vunpack.c.l.b16 %v123
    %v151 = vunpack.c.h.b16 %v123
    %v152 = vunpack.c.l.b16 %v124
    %v153 = vunpack.c.h.b16 %v124
    %v154 = vunpack.c.l.b16 %v125
    %v155 = vunpack.c.h.b16 %v125
    %v156 = vunpack.c.l.b16 %v126
    %v157 = vunpack.c.h.b16 %v126
    %v158 = vunpack.c.l.b16 %v127
    %v159 = vunpack.c.h.b16 %v127
    %v160 = vpack.c.b16 %v148, %v142
    %v161 = vpack.c.b16 %v149, %v143
    %v162 = vpack.c.b16 %v150, %v144
    %v163 = vpack.c.b16 %v151, %v145
    %v164 = vpack.c.b16 %v152, %v146
    %v165 = vpack.c.b16 %v153, %v147
    %v166 = vpack.c.b16 %v154, %v154
    %v167 = vpack.c.b16 %v155, %v155
    %v168 = vpack.c.b16 %v156, %v156
    %v169 = vpack.c.b16 %v157, %v157
    %v170 = vpack.c.b16 %v158, %v158
    %v171 = vpack.c.b16 %v159, %v159
    %v280 = vunpack.c.l.b16 %v23
    %v281 = vunpack.c.l.b16 %v24
    %v282 = vunpack.c.l.b16 %v25
    %v283 = vunpack.c.l.b16 %v26
    %v284 = vunpack.c.l.b16 %v27
    %v285 = vunpack.c.l.b16 %v28
    %v286 = vunpack.c.l.b16 %v29
    %v287 = vunpack.c.l.b16 %v30
    %v288 = vunpack.c.l.b16 %v31
    %v289 = vunpack.c.l.b16 %v32
    %v290 = vunpack.c.l.b16 %v33
    %v291 = vunpack.c.l.b16 %v34
    %v292 = vunpack.c.l.b16 %v35
    %v293 = vunpack.c.l.b16 %v36
    %v294 = vunpack.c.l.b16 %v37
    %v295 = vunpack.c.l.b16 %v38
    %v296 = vunpack.c.l.b16 %v39
    %v297 = vunpack.c.l.b16 %v40
    %v298 = vunpack.c.l.b16 %v41
    %v299 = vunpack.c.l.b16 %v42
    %v300 = vunpack.c.l.b16 %v43
    %v301 = vunpack.c.l.b16 %v44
    %v302 = vunpack.c.l.b16 %v45
    %v303 = vunpack.c.l.b16 %v46
    %v304 = vunpack.c.l.b16 %v47
    %v305 = vunpack.c.l.b16 %v48
    %v306 = vunpack.c.l.b16 %v49
    %v307 = vunpack.c.l.b16 %v50
    %v308 = vunpack.c.l.b16 %v51
    %v309 = vunpack.c.l.b16 %v52
    %v310 = vunpack.c.l.b16 %v53
    %v311 = vunpack.c.l.b16 %v54
    %v312 = vunpack.c.l.b16 %v55
    %v313 = vunpack.c.l.b16 %v56
    %v314 = vunpack.c.l.b16 %v57
    %v315 = vunpack.c.l.b16 %v58
    %v316 = vunpack.c.l.b16 %v59
    %v317 = vunpack.c.l.b16 %v60
    %v318 = vunpack.c.l.b16 %v61
    %v319 = vunpack.c.l.b16 %v62
    %v320 = vunpack.c.l.b16 %v63
    %v321 = vunpack.c.l.b16 %v64
    %v322 = vunpack.c.l.b16 %v65
    %v323 = vunpack.c.l.b16 %v66
    %v324 = vunpack.c.l.b16 %v67
    %v325 = vunpack.c.l.b16 %v68
    %v326 = vunpack.c.l.b16 %v69
    %v327 = vunpack.c.l.b16 %v70
    %v328 = vunpack.c.l.b16 %v71
    %v329 = vunpack.c.l.b16 %v72
    %v330 = vunpack.c.l.b16 %v73
    %v331 = vunpack.c.l.b16 %v74
    %v332 = vunpack.c.l.b16 %v75
    %v333 = vunpack.c.l.b16 %v76
    %v334 = vunpack.c.l.b16 %v77
    %v335 = vunpack.c.l.b16 %v78
    %v336 = vunpack.c.l.b16 %v79
    %v337 = vunpack.c.l.b16 %v80
    %v338 = vunpack.c.l.b16 %v81
    %v339 = vunpack.c.l.b16 %v82
    %v340 = vunpack.c.l.b16 %v83
    %v341 = vunpack.c.l.b16 %v84
    %v342 = vunpack.c.l.b16 %v85
    %v343 = vunpack.c.l.b16 %v86
    %v344 = vunpack.c.l.b16 %v87
    %v345 = vunpack.c.l.b16 %v88
    %v346 = vunpack.c.l.b16 %v89
    %v347 = vunpack.c.l.b16 %v90
    %v348 = vunpack.c.l.b16 %v91
    %v349 = vunpack.c.l.b16 %v92
    %v350 = vunpack.c.l.b16 %v93
    %v351 = vunpack.c.l.b16 %v94
    %v352 = vunpack.c.l.b16 %v95
    %v353 = vunpack.c.l.b16 %v96
    %v354 = vunpack.c.l.b16 %v97
    %v355 = vunpack.c.l.b16 %v98
    %v356 = vunpack.c.l.b16 %v99
    %v357 = vunpack.c.l.b16 %v100
    %v358 = vunpack.c.l.b16 %v101
    %v359 = vunpack.c.l.b16 %v102
    %v360 = vunpack.c.l.b16 %v103
    %v361 = vunpack.c.l.b16 %v104
    %v362 = vunpack.c.l.b16 %v105
    %v363 = vunpack.c.l.b16 %v106
    %v364 = vunpack.c.l.b16 %v107
    %v365 = vunpack.c.l.b16 %v108
    %v366 = vunpack.c.l.b16 %v109
    %v367 = vunpack.c.l.b16 %v110
    %v368 = vunpack.c.l.b16 %v111
    %v369 = vunpack.c.l.b16 %v112
    %v370 = vunpack.c.l.b16 %v113
    %v371 = vunpack.c.l.b16 %v114
    %v372 = vunpack.c.l.b16 %v115
    %v373 = vunpack.c.l.b16 %v116
    %v374 = vunpack.c.l.b16 %v117
    %v375 = vunpack.c.l.b16 %v118
    %v376 = vpack.c.b16 %v281, %v280
    %v377 = vpack.c.b16 %v283, %v282
    %v378 = vpack.c.b16 %v285, %v284
    %v379 = vpack.c.b16 %v287, %v286
    %v380 = vpack.c.b16 %v289, %v288
    %v381 = vpack.c.b16 %v291, %v290
    %v382 = vpack.c.b16 %v293, %v292
    %v383 = vpack.c.b16 %v295, %v294
    %v384 = vpack.c.b16 %v297, %v296
    %v385 = vpack.c.b16 %v299, %v298
    %v386 = vpack.c.b16 %v301, %v300
    %v387 = vpack.c.b16 %v303, %v302
    %v388 = vpack.c.b16 %v305, %v304
    %v389 = vpack.c.b16 %v307, %v306
    %v390 = vpack.c.b16 %v309, %v308
    %v391 = vpack.c.b16 %v311, %v310
    %v392 = vpack.c.b16 %v313, %v312
    %v393 = vpack.c.b16 %v315, %v314
    %v394 = vpack.c.b16 %v317, %v316
    %v395 = vpack.c.b16 %v319, %v318
    %v396 = vpack.c.b16 %v321, %v320
    %v397 = vpack.c.b16 %v323, %v322
    %v398 = vpack.c.b16 %v325, %v324
    %v399 = vpack.c.b16 %v327, %v326
    %v400 = vpack.c.b16 %v329, %v328
    %v401 = vpack.c.b16 %v331, %v330
    %v402 = vpack.c.b16 %v333, %v332
    %v403 = vpack.c.b16 %v335, %v334
    %v404 = vpack.c.b16 %v337, %v336
    %v405 = vpack.c.b16 %v339, %v338
    %v406 = vpack.c.b16 %v341, %v340
    %v407 = vpack.c.b16 %v343, %v342
    %v408 = vpack.c.b16 %v345, %v344
    %v409 = vpack.c.b16 %v347, %v346
    %v410 = vpack.c.b16 %v349, %v348
    %v411 = vpack.c.b16 %v351, %v350
    %v412 = vpack.c.b16 %v353, %v352
    %v413 = vpack.c.b16 %v355, %v354
    %v414 = vpack.c.b16 %v357, %v356
    %v415 = vpack.c.b16 %v359, %v358
    %v416 = vpack.c.b16 %v361, %v360
    %v417 = vpack.c.b16 %v363, %v362
    %v418 = vpack.c.b16 %v365, %v364
    %v419 = vpack.c.b16 %v367, %v366
    %v420 = vpack.c.b16 %v369, %v368
    %v421 = vpack.c.b16 %v371, %v370
    %v422 = vpack.c.b16 %v373, %v372
    %v423 = vpack.c.b16 %v375, %v374
    %472 = vmatprep.subr.bf16.mxu0 0
    %473 = vmatpush1.bf16.msra.mxu0 %v376
    %474 = vmatprep.subr.bf16.mxu0 0
    %475 = vmatpush1.bf16.msra.mxu0 %v377
    %476 = vmatprep.subr.bf16.mxu0 0
    %477 = vmatpush1.bf16.msra.mxu0 %v378
    %478 = vmatprep.subr.bf16.mxu0 0
    %479 = vmatpush1.bf16.msra.mxu0 %v379
    %480 = vmatprep.subr.bf16.mxu0 0
    %481 = vmatpush1.bf16.msra.mxu0 %v380
    %482 = vmatprep.subr.bf16.mxu0 0
    %483 = vmatpush1.bf16.msra.mxu0 %v381
    %484 = vmatprep.subr.bf16.mxu0 0
    %485 = vmatpush1.bf16.msra.mxu0 %v382
    %486 = vmatprep.subr.bf16.mxu0 0
    %487 = vmatpush1.bf16.msra.mxu0 %v383
    %488 = vmatprep.subr.bf16.mxu0 0
    %489 = vmatpush1.bf16.msra.mxu0 %v384
    %490 = vmatprep.subr.bf16.mxu0 0
    %491 = vmatpush1.bf16.msra.mxu0 %v385
    %492 = vmatprep.subr.bf16.mxu0 0
    %493 = vmatpush1.bf16.msra.mxu0 %v386
    %494 = vmatprep.subr.bf16.mxu0 0
    %495 = vmatpush1.bf16.msra.mxu0 %v387
    %496 = vmatprep.subr.bf16.mxu0 0
    %497 = vmatpush1.bf16.msra.mxu0 %v388
    %498 = vmatprep.subr.bf16.mxu0 0
    %499 = vmatpush1.bf16.msra.mxu0 %v389
    %500 = vmatprep.subr.bf16.mxu0 0
    %501 = vmatpush1.bf16.msra.mxu0 %v390
    %502 = vmatprep.subr.bf16.mxu0 0
    %503 = vmatpush1.bf16.msra.mxu0 %v391
    %504 = vmatprep.mubr.bf16.mxu0 %v161
    %505 = vmatmul.mubr.bf16.gmra.mrb[0].mxu0 %v160
    %v506 = vpop.f32.mrb[0].mxu0
    %v507 = vadd.f32 %v132, %v506
    %v508 = vpop.f32.mrb[0].mxu0
    %v509 = vpop.f32.mrb[0].mxu0
    %v510 = vadd.f32 %v132, %v509
    %v511 = vpop.f32.mrb[0].mxu0
    %512 = vmatprep.mubr.bf16.mxu0 %v167
    %513 = vmatmul.mubr.bf16.gmra.mrb[0].mxu0 %v166
    %v514 = vpop.f32.mrb[0].mxu0
    %v515 = vadd.f32 %v132, %v514
    %v516 = vpop.f32.mrb[0].mxu0
    %v517 = vpop.f32.mrb[0].mxu0
    %v518 = vpop.f32.mrb[0].mxu0
    %519 = vdwg.mxu0
    %520 = vmatprep.subr.bf16.mxu0 0
    %521 = vmatpush1.bf16.msra.mxu0 %v392
    %522 = vmatprep.subr.bf16.mxu0 0
    %523 = vmatpush1.bf16.msra.mxu0 %v393
    %524 = vmatprep.subr.bf16.mxu0 0
    %525 = vmatpush1.bf16.msra.mxu0 %v394
    %526 = vmatprep.subr.bf16.mxu0 0
    %527 = vmatpush1.bf16.msra.mxu0 %v395
    %528 = vmatprep.subr.bf16.mxu0 0
    %529 = vmatpush1.bf16.msra.mxu0 %v396
    %530 = vmatprep.subr.bf16.mxu0 0
    %531 = vmatpush1.bf16.msra.mxu0 %v397
    %532 = vmatprep.subr.bf16.mxu0 0
    %533 = vmatpush1.bf16.msra.mxu0 %v398
    %534 = vmatprep.subr.bf16.mxu0 0
    %535 = vmatpush1.bf16.msra.mxu0 %v399
    %536 = vmatprep.subr.bf16.mxu0 0
    %537 = vmatpush1.bf16.msra.mxu0 %v400
    %538 = vmatprep.subr.bf16.mxu0 0
    %539 = vmatpush1.bf16.msra.mxu0 %v401
    %540 = vmatprep.subr.bf16.mxu0 0
    %541 = vmatpush1.bf16.msra.mxu0 %v402
    %542 = vmatprep.subr.bf16.mxu0 0
    %543 = vmatpush1.bf16.msra.mxu0 %v403
    %544 = vmatprep.subr.bf16.mxu0 0
    %545 = vmatpush1.bf16.msra.mxu0 %v404
    %546 = vmatprep.subr.bf16.mxu0 0
    %547 = vmatpush1.bf16.msra.mxu0 %v405
    %548 = vmatprep.subr.bf16.mxu0 0
    %549 = vmatpush1.bf16.msra.mxu0 %v406
    %550 = vmatprep.subr.bf16.mxu0 0
    %551 = vmatpush1.bf16.msra.mxu0 %v407
    %552 = vmatprep.mubr.bf16.mxu0 %v163
    %553 = vmatmul.mubr.bf16.gmra.mrb[0].mxu0 %v162
    %v554 = vpop.f32.mrb[0].mxu0
    %v555 = vadd.f32 %v507, %v554
    %v556 = vpop.f32.mrb[0].mxu0
    %v557 = vpop.f32.mrb[0].mxu0
    %v558 = vadd.f32 %v510, %v557
    %v559 = vpop.f32.mrb[0].mxu0
    %560 = vmatprep.mubr.bf16.mxu0 %v169
    %561 = vmatmul.mubr.bf16.gmra.mrb[0].mxu0 %v168
    %v562 = vpop.f32.mrb[0].mxu0
    %v563 = vadd.f32 %v515, %v562
    %v564 = vpop.f32.mrb[0].mxu0
    %v565 = vpop.f32.mrb[0].mxu0
    %v566 = vpop.f32.mrb[0].mxu0
    %567 = vdwg.mxu0
    %568 = vmatprep.subr.bf16.mxu0 0
    %569 = vmatpush1.bf16.msra.mxu0 %v408
    %570 = vmatprep.subr.bf16.mxu0 0
    %571 = vmatpush1.bf16.msra.mxu0 %v409
    %572 = vmatprep.subr.bf16.mxu0 0
    %573 = vmatpush1.bf16.msra.mxu0 %v410
    %574 = vmatprep.subr.bf16.mxu0 0
    %575 = vmatpush1.bf16.msra.mxu0 %v411
    %576 = vmatprep.subr.bf16.mxu0 0
    %577 = vmatpush1.bf16.msra.mxu0 %v412
    %578 = vmatprep.subr.bf16.mxu0 0
    %579 = vmatpush1.bf16.msra.mxu0 %v413
    %580 = vmatprep.subr.bf16.mxu0 0
    %581 = vmatpush1.bf16.msra.mxu0 %v414
    %582 = vmatprep.subr.bf16.mxu0 0
    %583 = vmatpush1.bf16.msra.mxu0 %v415
    %584 = vmatprep.subr.bf16.mxu0 0
    %585 = vmatpush1.bf16.msra.mxu0 %v416
    %586 = vmatprep.subr.bf16.mxu0 0
    %587 = vmatpush1.bf16.msra.mxu0 %v417
    %588 = vmatprep.subr.bf16.mxu0 0
    %589 = vmatpush1.bf16.msra.mxu0 %v418
    %590 = vmatprep.subr.bf16.mxu0 0
    %591 = vmatpush1.bf16.msra.mxu0 %v419
    %592 = vmatprep.subr.bf16.mxu0 0
    %593 = vmatpush1.bf16.msra.mxu0 %v420
    %594 = vmatprep.subr.bf16.mxu0 0
    %595 = vmatpush1.bf16.msra.mxu0 %v421
    %596 = vmatprep.subr.bf16.mxu0 0
    %597 = vmatpush1.bf16.msra.mxu0 %v422
    %598 = vmatprep.subr.bf16.mxu0 0
    %599 = vmatpush1.bf16.msra.mxu0 %v423
    %600 = vmatprep.mubr.bf16.mxu0 %v165
    %601 = vmatmul.mubr.bf16.gmra.mrb[0].mxu0 %v164
    %v602 = vpop.f32.mrb[0].mxu0
    %v603 = vadd.f32 %v555, %v602
    %v604 = vpop.f32.mrb[0].mxu0
    %v605 = vpop.f32.mrb[0].mxu0
    %v606 = vadd.f32 %v558, %v605
    %v607 = vpop.f32.mrb[0].mxu0
    %608 = vmatprep.mubr.bf16.mxu0 %v171
    %609 = vmatmul.mubr.bf16.gmra.mrb[0].mxu0 %v170
    %v610 = vpop.f32.mrb[0].mxu0
    %v611 = vadd.f32 %v563, %v610
    %v612 = vpop.f32.mrb[0].mxu0
    %v613 = vpop.f32.mrb[0].mxu0
    %v614 = vpop.f32.mrb[0].mxu0
    %615 = vdwg.mxu0
    %v616 = vmax.f32 %v603, 0.0
    %v617 = vmax.f32 %v606, 0.0
    %v618 = vmax.f32 %v611, 0.0
    %v619 = vld [vmem:[%s1] sm:$0x3]
    %v620 = vld [vmem:[%s2 + $0x180] sm:$0xf]
    %v621 = vld [vmem:[%s2 + $0x184] sm:$0xf]
    %v622 = vld [vmem:[%s2 + $0x188] sm:$0xf]
    %v623 = vld [vmem:[%s2 + $0x18c] sm:$0xf]
    %v624 = vld [vmem:[%s3 + $0x1] sm:$0x1]
    %v625 = vlaneseq
    %v626 = vshrl.u32 %v625, 7
    %v627 = vsub.s32 0, %v626
    %v628 = vrot.slane %v624, %v627
    %v633 = vunpack.c.l.b16 %v620
    %v634 = vunpack.c.l.b16 %v621
    %v635 = vunpack.c.l.b16 %v622
    %v636 = vunpack.c.l.b16 %v623
    %v637 = vpack.c.b16 %v634, %v633
    %v638 = vpack.c.b16 %v636, %v635
    %vm641 = vcmask 261120
    %v643 = vsel %vm641, %v619, 0
    %645 = vmatprep.subr.bf16.mxu0 0
    %646 = vmatpush1.bf16.msra.mxu0 %v637
    %647 = vmatprep.subr.bf16.mxu0 0
    %648 = vmatpush1.bf16.msra.mxu0 %v638
    %649 = vmatprep.subr.bf16.mxu0 0
    %650 = vmatpush1.bf16.msra.mxu0 0
    %651 = vmatprep.subr.bf16.mxu0 0
    %652 = vmatpush1.bf16.msra.mxu0 0
    %653 = vmatprep.subr.bf16.mxu0 0
    %654 = vmatpush1.bf16.msra.mxu0 0
    %655 = vmatprep.subr.bf16.mxu0 0
    %656 = vmatpush1.bf16.msra.mxu0 0
    %657 = vmatprep.subr.bf16.mxu0 0
    %658 = vmatpush1.bf16.msra.mxu0 0
    %659 = vmatprep.subr.bf16.mxu0 0
    %660 = vmatpush1.bf16.msra.mxu0 0
    %661 = vmatprep.subr.bf16.mxu0 0
    %662 = vmatpush1.bf16.msra.mxu0 0
    %663 = vmatprep.subr.bf16.mxu0 0
    %664 = vmatpush1.bf16.msra.mxu0 0
    %665 = vmatprep.subr.bf16.mxu0 0
    %666 = vmatpush1.bf16.msra.mxu0 0
    %667 = vmatprep.subr.bf16.mxu0 0
    %668 = vmatpush1.bf16.msra.mxu0 0
    %669 = vmatprep.subr.bf16.mxu0 0
    %670 = vmatpush1.bf16.msra.mxu0 0
    %671 = vmatprep.subr.bf16.mxu0 0
    %672 = vmatpush1.bf16.msra.mxu0 0
    %673 = vmatprep.subr.bf16.mxu0 0
    %674 = vmatpush1.bf16.msra.mxu0 0
    %675 = vmatprep.subr.bf16.mxu0 0
    %676 = vmatpush1.bf16.msra.mxu0 0
    %677 = vmatprep.mubr.bf16.mxu0 0
    %678 = vmatmul.mubr.bf16.gmra.mrb[0].mxu0 %v643
    %v679 = vpop.f32.mrb[0].mxu0
    %v680 = vadd.f32 %v628, %v679
    %v681 = vpop.f32.mrb[0].mxu0
    %v682 = vpop.f32.mrb[0].mxu0
    %v683 = vpop.f32.mrb[0].mxu0
    %684 = vdwg.mxu0
    %v685 = vmul.f32 %v603, %v603
    %vm686 = vcmask 517120
    %v687 = vsel %vm686, %v685, 0.0
    %688 = vadd.xlane.f32.xlu0 %v687
    %v689 = vpop.xlane.xlu0 %688
    %v690 = vadd.f32 %v689, 1e-12
    %v691 = vrsqrt.pop %v690
    %v692 = vmul.f32 %v603, %v691
    %v693 = vmul.f32 %v680, %v680
    %vm694 = vcmask 519168
    %v695 = vsel %vm694, %v693, 0.0
    %696 = vadd.xlane.f32.xlu0 %v695
    %v697 = vpop.xlane.xlu0 %696
    %v698 = vadd.f32 %v697, 1e-12
    %v699 = vrsqrt.pop %v698
    %v700 = vmul.f32 %v680, %v699
    %s701 = sld [smem:[#allocation2]]
    %v702 = vpack.c.bf16 %v692, %v692
    %v703 = vpack.c.bf16 %v700, %v700
    %vm704 = vcmask 523264
    %v706 = vsel %vm704, %v702, 0
    %v709 = vsel %vm704, %v703, 0
    %711 = vmatprep.subr.bf16.mxu0 0
    %712 = vmatpush1.bf16.xpose.msra.mxu0 %v709
    %713 = vmatprep.subr.bf16.mxu0 0
    %714 = vmatpush1.bf16.xpose.msra.mxu0 0
    %715 = vmatprep.subr.bf16.mxu0 0
    %716 = vmatpush1.bf16.xpose.msra.mxu0 0
    %717 = vmatprep.subr.bf16.mxu0 0
    %718 = vmatpush1.bf16.xpose.msra.mxu0 0
    %719 = vmatprep.subr.bf16.mxu0 0
    %720 = vmatpush1.bf16.xpose.msra.mxu0 0
    %721 = vmatprep.subr.bf16.mxu0 0
    %722 = vmatpush1.bf16.xpose.msra.mxu0 0
    %723 = vmatprep.subr.bf16.mxu0 0
    %724 = vmatpush1.bf16.xpose.msra.mxu0 0
    %725 = vmatprep.subr.bf16.mxu0 0
    %726 = vmatpush1.bf16.xpose.msra.mxu0 0
    %727 = vmatprep.subr.bf16.mxu0 0
    %728 = vmatpush1.bf16.xpose.msra.mxu0 0
    %729 = vmatprep.subr.bf16.mxu0 0
    %730 = vmatpush1.bf16.xpose.msra.mxu0 0
    %731 = vmatprep.subr.bf16.mxu0 0
    %732 = vmatpush1.bf16.xpose.msra.mxu0 0
    %733 = vmatprep.subr.bf16.mxu0 0
    %734 = vmatpush1.bf16.xpose.msra.mxu0 0
    %735 = vmatprep.subr.bf16.mxu0 0
    %736 = vmatpush1.bf16.xpose.msra.mxu0 0
    %737 = vmatprep.subr.bf16.mxu0 0
    %738 = vmatpush1.bf16.xpose.msra.mxu0 0
    %739 = vmatprep.subr.bf16.mxu0 0
    %740 = vmatpush1.bf16.xpose.msra.mxu0 0
    %741 = vmatprep.subr.bf16.mxu0 0
    %742 = vmatpush1.bf16.xpose.msra.mxu0 0
    %743 = vmatprep.mubr.bf16.mxu0 0
    %744 = vmatmul.mubr.bf16.gmra.mrb[0].mxu0 %v706
    %v745 = vpop.f32.mrb[0].mxu0
    %v746 = vadd.f32 0.0, %v745
    %v747 = vpop.f32.mrb[0].mxu0
    %v748 = vpop.f32.mrb[0].mxu0
    %v749 = vpop.f32.mrb[0].mxu0
    %750 = vdwg.mxu0
    %v751 = vstv %s701
    %v752 = vmul.f32 %v751, %v746
    %v753 = vpack.c.bf16 %v617, %v616
    %v754 = vpack.c.bf16 %v618, %v618
    %v755 = vld [vmem:[%s2 + $0x190] sm:$0xf]
    %v756 = vld [vmem:[%s2 + $0x194] sm:$0xf]
    %v757 = vld [vmem:[%s2 + $0x198] sm:$0xf]
    %v758 = vld [vmem:[%s2 + $0x19c] sm:$0xf]
    %v759 = vld [vmem:[%s3 + $0x2] sm:$0x1]
    %v760 = vlaneseq
    %v761 = vshrl.u32 %v760, 7
    %v762 = vsub.s32 0, %v761
    %v763 = vrot.slane %v759, %v762
    %vm766 = vcmask 1046528
    %v767 = vrot.slane %v753, 1
    %v768 = vrot.slane %v754, 1
    %v769 = vsel %vm766, %v767, %v768
    %770 = vrot.lane.b32.xlu0 %v769, 64
    %v771 = vpop.permute.xlu0 %770
    %v776 = vunpack.c.l.b16 %v755
    %v777 = vunpack.c.l.b16 %v756
    %v778 = vunpack.c.l.b16 %v757
    %v779 = vunpack.c.l.b16 %v758
    %v780 = vpack.c.b16 %v777, %v776
    %v781 = vpack.c.b16 %v779, %v778
    %v785 = vsel %vm641, %v771, 0
    %787 = vmatprep.subr.bf16.mxu0 0
    %788 = vmatpush1.bf16.msra.mxu0 %v780
    %789 = vmatprep.subr.bf16.mxu0 0
    %790 = vmatpush1.bf16.msra.mxu0 %v781
    %791 = vmatprep.subr.bf16.mxu0 0
    %792 = vmatpush1.bf16.msra.mxu0 0
    %793 = vmatprep.subr.bf16.mxu0 0
    %794 = vmatpush1.bf16.msra.mxu0 0
    %795 = vmatprep.subr.bf16.mxu0 0
    %796 = vmatpush1.bf16.msra.mxu0 0
    %797 = vmatprep.subr.bf16.mxu0 0
    %798 = vmatpush1.bf16.msra.mxu0 0
    %799 = vmatprep.subr.bf16.mxu0 0
    %800 = vmatpush1.bf16.msra.mxu0 0
    %801 = vmatprep.subr.bf16.mxu0 0
    %802 = vmatpush1.bf16.msra.mxu0 0
    %803 = vmatprep.subr.bf16.mxu0 0
    %804 = vmatpush1.bf16.msra.mxu0 0
    %805 = vmatprep.subr.bf16.mxu0 0
    %806 = vmatpush1.bf16.msra.mxu0 0
    %807 = vmatprep.subr.bf16.mxu0 0
    %808 = vmatpush1.bf16.msra.mxu0 0
    %809 = vmatprep.subr.bf16.mxu0 0
    %810 = vmatpush1.bf16.msra.mxu0 0
    %811 = vmatprep.subr.bf16.mxu0 0
    %812 = vmatpush1.bf16.msra.mxu0 0
    %813 = vmatprep.subr.bf16.mxu0 0
    %814 = vmatpush1.bf16.msra.mxu0 0
    %815 = vmatprep.subr.bf16.mxu0 0
    %816 = vmatpush1.bf16.msra.mxu0 0
    %817 = vmatprep.subr.bf16.mxu0 0
    %818 = vmatpush1.bf16.msra.mxu0 0
    %819 = vmatprep.mubr.bf16.mxu0 0
    %820 = vmatmul.mubr.bf16.gmra.mrb[0].mxu0 %v785
    %v821 = vpop.f32.mrb[0].mxu0
    %v822 = vadd.f32 %v763, %v821
    %v823 = vpop.f32.mrb[0].mxu0
    %v824 = vpop.f32.mrb[0].mxu0
    %v825 = vadd.f32 %v763, %v824
    %v826 = vpop.f32.mrb[0].mxu0
    %827 = vdwg.mxu0
    %v828 = vld [vmem:[%s2 + $0x1a0] sm:$0xf]
    %v829 = vld [vmem:[%s2 + $0x1a4] sm:$0xf]
    %v830 = vld [vmem:[%s2 + $0x1a8] sm:$0xf]
    %v831 = vld [vmem:[%s2 + $0x1ac] sm:$0xf]
    %v836 = vunpack.c.l.b16 %v828
    %v837 = vunpack.c.l.b16 %v829
    %v838 = vunpack.c.l.b16 %v830
    %v839 = vunpack.c.l.b16 %v831
    %v840 = vpack.c.b16 %v837, %v836
    %v841 = vpack.c.b16 %v839, %v838
    %v845 = vsel %vm641, 0, 0
    %847 = vmatprep.subr.bf16.mxu0 0
    %848 = vmatpush1.bf16.msra.mxu0 %v840
    %849 = vmatprep.subr.bf16.mxu0 0
    %850 = vmatpush1.bf16.msra.mxu0 %v841
    %851 = vmatprep.subr.bf16.mxu0 0
    %852 = vmatpush1.bf16.msra.mxu0 0
    %853 = vmatprep.subr.bf16.mxu0 0
    %854 = vmatpush1.bf16.msra.mxu0 0
    %855 = vmatprep.subr.bf16.mxu0 0
    %856 = vmatpush1.bf16.msra.mxu0 0
    %857 = vmatprep.subr.bf16.mxu0 0
    %858 = vmatpush1.bf16.msra.mxu0 0
    %859 = vmatprep.subr.bf16.mxu0 0
    %860 = vmatpush1.bf16.msra.mxu0 0
    %861 = vmatprep.subr.bf16.mxu0 0
    %862 = vmatpush1.bf16.msra.mxu0 0
    %863 = vmatprep.subr.bf16.mxu0 0
    %864 = vmatpush1.bf16.msra.mxu0 0
    %865 = vmatprep.subr.bf16.mxu0 0
    %866 = vmatpush1.bf16.msra.mxu0 0
    %867 = vmatprep.subr.bf16.mxu0 0
    %868 = vmatpush1.bf16.msra.mxu0 0
    %869 = vmatprep.subr.bf16.mxu0 0
    %870 = vmatpush1.bf16.msra.mxu0 0
    %871 = vmatprep.subr.bf16.mxu0 0
    %872 = vmatpush1.bf16.msra.mxu0 0
    %873 = vmatprep.subr.bf16.mxu0 0
    %874 = vmatpush1.bf16.msra.mxu0 0
    %875 = vmatprep.subr.bf16.mxu0 0
    %876 = vmatpush1.bf16.msra.mxu0 0
    %877 = vmatprep.subr.bf16.mxu0 0
    %878 = vmatpush1.bf16.msra.mxu0 0
    %879 = vmatprep.mubr.bf16.mxu0 0
    %880 = vmatmul.mubr.bf16.gmra.mrb[0].mxu0 %v845
    %v881 = vpop.f32.mrb[0].mxu0
    %v882 = vadd.f32 0.0, %v881
    %v883 = vpop.f32.mrb[0].mxu0
    %v884 = vpop.f32.mrb[0].mxu0
    %v885 = vpop.f32.mrb[0].mxu0
    %886 = vdwg.mxu0
    %v887 = vadd.f32 %v822, %v882
    %v888 = vtanh.pop %v887
    %v889 = vpack.c.bf16 %v888, %v888
    %v891 = vsel %vm641, %v889, 0
    %893 = vmatprep.subr.bf16.mxu0 0
    %894 = vmatpush1.bf16.msra.mxu0 %v840
    %895 = vmatprep.subr.bf16.mxu0 0
    %896 = vmatpush1.bf16.msra.mxu0 %v841
    %897 = vmatprep.subr.bf16.mxu0 0
    %898 = vmatpush1.bf16.msra.mxu0 0
    %899 = vmatprep.subr.bf16.mxu0 0
    %900 = vmatpush1.bf16.msra.mxu0 0
    %901 = vmatprep.subr.bf16.mxu0 0
    %902 = vmatpush1.bf16.msra.mxu0 0
    %903 = vmatprep.subr.bf16.mxu0 0
    %904 = vmatpush1.bf16.msra.mxu0 0
    %905 = vmatprep.subr.bf16.mxu0 0
    %906 = vmatpush1.bf16.msra.mxu0 0
    %907 = vmatprep.subr.bf16.mxu0 0
    %908 = vmatpush1.bf16.msra.mxu0 0
    %909 = vmatprep.subr.bf16.mxu0 0
    %910 = vmatpush1.bf16.msra.mxu0 0
    %911 = vmatprep.subr.bf16.mxu0 0
    %912 = vmatpush1.bf16.msra.mxu0 0
    %913 = vmatprep.subr.bf16.mxu0 0
    %914 = vmatpush1.bf16.msra.mxu0 0
    %915 = vmatprep.subr.bf16.mxu0 0
    %916 = vmatpush1.bf16.msra.mxu0 0
    %917 = vmatprep.subr.bf16.mxu0 0
    %918 = vmatpush1.bf16.msra.mxu0 0
    %919 = vmatprep.subr.bf16.mxu0 0
    %920 = vmatpush1.bf16.msra.mxu0 0
    %921 = vmatprep.subr.bf16.mxu0 0
    %922 = vmatpush1.bf16.msra.mxu0 0
    %923 = vmatprep.subr.bf16.mxu0 0
    %924 = vmatpush1.bf16.msra.mxu0 0
    %925 = vmatprep.mubr.bf16.mxu0 0
    %926 = vmatmul.mubr.bf16.gmra.mrb[0].mxu0 %v891
    %v927 = vpop.f32.mrb[0].mxu0
    %v928 = vadd.f32 0.0, %v927
    %v929 = vpop.f32.mrb[0].mxu0
    %v930 = vpop.f32.mrb[0].mxu0
    %v931 = vpop.f32.mrb[0].mxu0
    %932 = vdwg.mxu0
    %v934 = vrot.slane %v928, 6
    %v936 = vadd.f32 %v822, %v934
    %v937 = vtanh.pop %v936
    %v938 = vpack.c.bf16 %v937, %v937
    %v940 = vrot.slane %v938, 1
    %v942 = vsel %vm641, %v940, 0
    %944 = vmatprep.subr.bf16.mxu0 0
    %945 = vmatpush1.bf16.msra.mxu0 %v840
    %946 = vmatprep.subr.bf16.mxu0 0
    %947 = vmatpush1.bf16.msra.mxu0 %v841
    %948 = vmatprep.subr.bf16.mxu0 0
    %949 = vmatpush1.bf16.msra.mxu0 0
    %950 = vmatprep.subr.bf16.mxu0 0
    %951 = vmatpush1.bf16.msra.mxu0 0
    %952 = vmatprep.subr.bf16.mxu0 0
    %953 = vmatpush1.bf16.msra.mxu0 0
    %954 = vmatprep.subr.bf16.mxu0 0
    %955 = vmatpush1.bf16.msra.mxu0 0
    %956 = vmatprep.subr.bf16.mxu0 0
    %957 = vmatpush1.bf16.msra.mxu0 0
    %958 = vmatprep.subr.bf16.mxu0 0
    %959 = vmatpush1.bf16.msra.mxu0 0
    %960 = vmatprep.subr.bf16.mxu0 0
    %961 = vmatpush1.bf16.msra.mxu0 0
    %962 = vmatprep.subr.bf16.mxu0 0
    %963 = vmatpush1.bf16.msra.mxu0 0
    %964 = vmatprep.subr.bf16.mxu0 0
    %965 = vmatpush1.bf16.msra.mxu0 0
    %966 = vmatprep.subr.bf16.mxu0 0
    %967 = vmatpush1.bf16.msra.mxu0 0
    %968 = vmatprep.subr.bf16.mxu0 0
    %969 = vmatpush1.bf16.msra.mxu0 0
    %970 = vmatprep.subr.bf16.mxu0 0
    %971 = vmatpush1.bf16.msra.mxu0 0
    %972 = vmatprep.subr.bf16.mxu0 0
    %973 = vmatpush1.bf16.msra.mxu0 0
    %974 = vmatprep.subr.bf16.mxu0 0
    %975 = vmatpush1.bf16.msra.mxu0 0
    %976 = vmatprep.mubr.bf16.mxu0 0
    %977 = vmatmul.mubr.bf16.gmra.mrb[0].mxu0 %v942
    %v978 = vpop.f32.mrb[0].mxu0
    %v979 = vadd.f32 0.0, %v978
    %v980 = vpop.f32.mrb[0].mxu0
    %v981 = vpop.f32.mrb[0].mxu0
    %v982 = vpop.f32.mrb[0].mxu0
    %983 = vdwg.mxu0
    %v985 = vrot.slane %v979, 4
    %v987 = vadd.f32 %v822, %v985
    %v988 = vtanh.pop %v987
    %v989 = vpack.c.bf16 %v988, %v988
    %v991 = vrot.slane %v989, 2
    %v993 = vsel %vm641, %v991, 0
    %995 = vmatprep.subr.bf16.mxu0 0
    %996 = vmatpush1.bf16.msra.mxu0 %v840
    %997 = vmatprep.subr.bf16.mxu0 0
    %998 = vmatpush1.bf16.msra.mxu0 %v841
    %999 = vmatprep.subr.bf16.mxu0 0
    %1000 = vmatpush1.bf16.msra.mxu0 0
    %1001 = vmatprep.subr.bf16.mxu0 0
    %1002 = vmatpush1.bf16.msra.mxu0 0
    %1003 = vmatprep.subr.bf16.mxu0 0
    %1004 = vmatpush1.bf16.msra.mxu0 0
    %1005 = vmatprep.subr.bf16.mxu0 0
    %1006 = vmatpush1.bf16.msra.mxu0 0
    %1007 = vmatprep.subr.bf16.mxu0 0
    %1008 = vmatpush1.bf16.msra.mxu0 0
    %1009 = vmatprep.subr.bf16.mxu0 0
    %1010 = vmatpush1.bf16.msra.mxu0 0
    %1011 = vmatprep.subr.bf16.mxu0 0
    %1012 = vmatpush1.bf16.msra.mxu0 0
    %1013 = vmatprep.subr.bf16.mxu0 0
    %1014 = vmatpush1.bf16.msra.mxu0 0
    %1015 = vmatprep.subr.bf16.mxu0 0
    %1016 = vmatpush1.bf16.msra.mxu0 0
    %1017 = vmatprep.subr.bf16.mxu0 0
    %1018 = vmatpush1.bf16.msra.mxu0 0
    %1019 = vmatprep.subr.bf16.mxu0 0
    %1020 = vmatpush1.bf16.msra.mxu0 0
    %1021 = vmatprep.subr.bf16.mxu0 0
    %1022 = vmatpush1.bf16.msra.mxu0 0
    %1023 = vmatprep.subr.bf16.mxu0 0
    %1024 = vmatpush1.bf16.msra.mxu0 0
    %1025 = vmatprep.subr.bf16.mxu0 0
    %1026 = vmatpush1.bf16.msra.mxu0 0
    %1027 = vmatprep.mubr.bf16.mxu0 0
    %1028 = vmatmul.mubr.bf16.gmra.mrb[0].mxu0 %v993
    %v1029 = vpop.f32.mrb[0].mxu0
    %v1030 = vadd.f32 0.0, %v1029
    %v1031 = vpop.f32.mrb[0].mxu0
    %v1032 = vpop.f32.mrb[0].mxu0
    %v1033 = vpop.f32.mrb[0].mxu0
    %1034 = vdwg.mxu0
    %v1036 = vrot.slane %v1030, 2
    %v1038 = vadd.f32 %v822, %v1036
    %v1039 = vtanh.pop %v1038
    %v1040 = vpack.c.bf16 %v1039, %v1039
    %v1042 = vrot.slane %v1040, 3
    %v1044 = vsel %vm641, %v1042, 0
    %1046 = vmatprep.subr.bf16.mxu0 0
    %1047 = vmatpush1.bf16.msra.mxu0 %v840
    %1048 = vmatprep.subr.bf16.mxu0 0
    %1049 = vmatpush1.bf16.msra.mxu0 %v841
    %1050 = vmatprep.subr.bf16.mxu0 0
    %1051 = vmatpush1.bf16.msra.mxu0 0
    %1052 = vmatprep.subr.bf16.mxu0 0
    %1053 = vmatpush1.bf16.msra.mxu0 0
    %1054 = vmatprep.subr.bf16.mxu0 0
    %1055 = vmatpush1.bf16.msra.mxu0 0
    %1056 = vmatprep.subr.bf16.mxu0 0
    %1057 = vmatpush1.bf16.msra.mxu0 0
    %1058 = vmatprep.subr.bf16.mxu0 0
    %1059 = vmatpush1.bf16.msra.mxu0 0
    %1060 = vmatprep.subr.bf16.mxu0 0
    %1061 = vmatpush1.bf16.msra.mxu0 0
    %1062 = vmatprep.subr.bf16.mxu0 0
    %1063 = vmatpush1.bf16.msra.mxu0 0
    %1064 = vmatprep.subr.bf16.mxu0 0
    %1065 = vmatpush1.bf16.msra.mxu0 0
    %1066 = vmatprep.subr.bf16.mxu0 0
    %1067 = vmatpush1.bf16.msra.mxu0 0
    %1068 = vmatprep.subr.bf16.mxu0 0
    %1069 = vmatpush1.bf16.msra.mxu0 0
    %1070 = vmatprep.subr.bf16.mxu0 0
    %1071 = vmatpush1.bf16.msra.mxu0 0
    %1072 = vmatprep.subr.bf16.mxu0 0
    %1073 = vmatpush1.bf16.msra.mxu0 0
    %1074 = vmatprep.subr.bf16.mxu0 0
    %1075 = vmatpush1.bf16.msra.mxu0 0
    %1076 = vmatprep.subr.bf16.mxu0 0
    %1077 = vmatpush1.bf16.msra.mxu0 0
    %1078 = vmatprep.mubr.bf16.mxu0 0
    %1079 = vmatmul.mubr.bf16.gmra.mrb[0].mxu0 %v1044
    %v1080 = vpop.f32.mrb[0].mxu0
    %v1081 = vadd.f32 0.0, %v1080
    %v1082 = vpop.f32.mrb[0].mxu0
    %v1083 = vpop.f32.mrb[0].mxu0
    %v1084 = vpop.f32.mrb[0].mxu0
    %1085 = vdwg.mxu0
    %v1086 = vadd.f32 %v825, %v1081
    %v1087 = vtanh.pop %v1086
    %v1088 = vpack.c.bf16 %v1087, %v1087
    %v1090 = vsel %vm641, %v1088, 0
    %1092 = vmatprep.subr.bf16.mxu0 0
    %1093 = vmatpush1.bf16.msra.mxu0 %v840
    %1094 = vmatprep.subr.bf16.mxu0 0
    %1095 = vmatpush1.bf16.msra.mxu0 %v841
    %1096 = vmatprep.subr.bf16.mxu0 0
    %1097 = vmatpush1.bf16.msra.mxu0 0
    %1098 = vmatprep.subr.bf16.mxu0 0
    %1099 = vmatpush1.bf16.msra.mxu0 0
    %1100 = vmatprep.subr.bf16.mxu0 0
    %1101 = vmatpush1.bf16.msra.mxu0 0
    %1102 = vmatprep.subr.bf16.mxu0 0
    %1103 = vmatpush1.bf16.msra.mxu0 0
    %1104 = vmatprep.subr.bf16.mxu0 0
    %1105 = vmatpush1.bf16.msra.mxu0 0
    %1106 = vmatprep.subr.bf16.mxu0 0
    %1107 = vmatpush1.bf16.msra.mxu0 0
    %1108 = vmatprep.subr.bf16.mxu0 0
    %1109 = vmatpush1.bf16.msra.mxu0 0
    %1110 = vmatprep.subr.bf16.mxu0 0
    %1111 = vmatpush1.bf16.msra.mxu0 0
    %1112 = vmatprep.subr.bf16.mxu0 0
    %1113 = vmatpush1.bf16.msra.mxu0 0
    %1114 = vmatprep.subr.bf16.mxu0 0
    %1115 = vmatpush1.bf16.msra.mxu0 0
    %1116 = vmatprep.subr.bf16.mxu0 0
    %1117 = vmatpush1.bf16.msra.mxu0 0
    %1118 = vmatprep.subr.bf16.mxu0 0
    %1119 = vmatpush1.bf16.msra.mxu0 0
    %1120 = vmatprep.subr.bf16.mxu0 0
    %1121 = vmatpush1.bf16.msra.mxu0 0
    %1122 = vmatprep.subr.bf16.mxu0 0
    %1123 = vmatpush1.bf16.msra.mxu0 0
    %1124 = vmatprep.mubr.bf16.mxu0 0
    %1125 = vmatmul.mubr.bf16.gmra.mrb[0].mxu0 %v1090
    %v1126 = vpop.f32.mrb[0].mxu0
    %v1127 = vadd.f32 0.0, %v1126
    %v1128 = vpop.f32.mrb[0].mxu0
    %v1129 = vpop.f32.mrb[0].mxu0
    %v1130 = vpop.f32.mrb[0].mxu0
    %1131 = vdwg.mxu0
    %v1133 = vrot.slane %v1127, 6
    %v1135 = vadd.f32 %v825, %v1133
    %v1136 = vtanh.pop %v1135
    %v1137 = vpack.c.bf16 %v1136, %v1136
    %v1139 = vrot.slane %v1137, 1
    %v1141 = vsel %vm641, %v1139, 0
    %1143 = vmatprep.subr.bf16.mxu0 0
    %1144 = vmatpush1.bf16.msra.mxu0 %v840
    %1145 = vmatprep.subr.bf16.mxu0 0
    %1146 = vmatpush1.bf16.msra.mxu0 %v841
    %1147 = vmatprep.subr.bf16.mxu0 0
    %1148 = vmatpush1.bf16.msra.mxu0 0
    %1149 = vmatprep.subr.bf16.mxu0 0
    %1150 = vmatpush1.bf16.msra.mxu0 0
    %1151 = vmatprep.subr.bf16.mxu0 0
    %1152 = vmatpush1.bf16.msra.mxu0 0
    %1153 = vmatprep.subr.bf16.mxu0 0
    %1154 = vmatpush1.bf16.msra.mxu0 0
    %1155 = vmatprep.subr.bf16.mxu0 0
    %1156 = vmatpush1.bf16.msra.mxu0 0
    %1157 = vmatprep.subr.bf16.mxu0 0
    %1158 = vmatpush1.bf16.msra.mxu0 0
    %1159 = vmatprep.subr.bf16.mxu0 0
    %1160 = vmatpush1.bf16.msra.mxu0 0
    %1161 = vmatprep.subr.bf16.mxu0 0
    %1162 = vmatpush1.bf16.msra.mxu0 0
    %1163 = vmatprep.subr.bf16.mxu0 0
    %1164 = vmatpush1.bf16.msra.mxu0 0
    %1165 = vmatprep.subr.bf16.mxu0 0
    %1166 = vmatpush1.bf16.msra.mxu0 0
    %1167 = vmatprep.subr.bf16.mxu0 0
    %1168 = vmatpush1.bf16.msra.mxu0 0
    %1169 = vmatprep.subr.bf16.mxu0 0
    %1170 = vmatpush1.bf16.msra.mxu0 0
    %1171 = vmatprep.subr.bf16.mxu0 0
    %1172 = vmatpush1.bf16.msra.mxu0 0
    %1173 = vmatprep.subr.bf16.mxu0 0
    %1174 = vmatpush1.bf16.msra.mxu0 0
    %1175 = vmatprep.mubr.bf16.mxu0 0
    %1176 = vmatmul.mubr.bf16.gmra.mrb[0].mxu0 %v1141
    %v1177 = vpop.f32.mrb[0].mxu0
    %v1178 = vadd.f32 0.0, %v1177
    %v1179 = vpop.f32.mrb[0].mxu0
    %v1180 = vpop.f32.mrb[0].mxu0
    %v1181 = vpop.f32.mrb[0].mxu0
    %1182 = vdwg.mxu0
    %v1184 = vrot.slane %v1178, 4
    %v1186 = vadd.f32 %v825, %v1184
    %v1187 = vtanh.pop %v1186
    %v1188 = vpack.c.bf16 %v1187, %v1187
    %v1190 = vrot.slane %v1188, 2
    %v1192 = vsel %vm641, %v1190, 0
    %1194 = vmatprep.subr.bf16.mxu0 0
    %1195 = vmatpush1.bf16.msra.mxu0 %v840
    %1196 = vmatprep.subr.bf16.mxu0 0
    %1197 = vmatpush1.bf16.msra.mxu0 %v841
    %1198 = vmatprep.subr.bf16.mxu0 0
    %1199 = vmatpush1.bf16.msra.mxu0 0
    %1200 = vmatprep.subr.bf16.mxu0 0
    %1201 = vmatpush1.bf16.msra.mxu0 0
    %1202 = vmatprep.subr.bf16.mxu0 0
    %1203 = vmatpush1.bf16.msra.mxu0 0
    %1204 = vmatprep.subr.bf16.mxu0 0
    %1205 = vmatpush1.bf16.msra.mxu0 0
    %1206 = vmatprep.subr.bf16.mxu0 0
    %1207 = vmatpush1.bf16.msra.mxu0 0
    %1208 = vmatprep.subr.bf16.mxu0 0
    %1209 = vmatpush1.bf16.msra.mxu0 0
    %1210 = vmatprep.subr.bf16.mxu0 0
    %1211 = vmatpush1.bf16.msra.mxu0 0
    %1212 = vmatprep.subr.bf16.mxu0 0
    %1213 = vmatpush1.bf16.msra.mxu0 0
    %1214 = vmatprep.subr.bf16.mxu0 0
    %1215 = vmatpush1.bf16.msra.mxu0 0
    %1216 = vmatprep.subr.bf16.mxu0 0
    %1217 = vmatpush1.bf16.msra.mxu0 0
    %1218 = vmatprep.subr.bf16.mxu0 0
    %1219 = vmatpush1.bf16.msra.mxu0 0
    %1220 = vmatprep.subr.bf16.mxu0 0
    %1221 = vmatpush1.bf16.msra.mxu0 0
    %1222 = vmatprep.subr.bf16.mxu0 0
    %1223 = vmatpush1.bf16.msra.mxu0 0
    %1224 = vmatprep.subr.bf16.mxu0 0
    %1225 = vmatpush1.bf16.msra.mxu0 0
    %1226 = vmatprep.mubr.bf16.mxu0 0
    %1227 = vmatmul.mubr.bf16.gmra.mrb[0].mxu0 %v1192
    %v1228 = vpop.f32.mrb[0].mxu0
    %v1229 = vadd.f32 0.0, %v1228
    %v1230 = vpop.f32.mrb[0].mxu0
    %v1231 = vpop.f32.mrb[0].mxu0
    %v1232 = vpop.f32.mrb[0].mxu0
    %1233 = vdwg.mxu0
    %v1235 = vrot.slane %v1229, 2
    %v1237 = vadd.f32 %v825, %v1235
    %v1238 = vtanh.pop %v1237
    %v1239 = vpack.c.bf16 %v1238, %v1238
    %v1240 = vld [vmem:[%s2 + $0x1b0] sm:$0xf]
    %v1241 = vld [vmem:[%s2 + $0x1b4] sm:$0xf]
    %v1242 = vld [vmem:[%s2 + $0x1b8] sm:$0xf]
    %v1243 = vld [vmem:[%s2 + $0x1bc] sm:$0xf]
    %v1244 = vld [vmem:[%s3 + $0x3] sm:$0x1]
    %v1245 = vlaneseq
    %v1246 = vshrl.u32 %v1245, 7
    %v1247 = vsub.s32 0, %v1246
    %v1248 = vrot.slane %v1244, %v1247
    %v1250 = vrot.slane %v1239, 3
    %v1255 = vunpack.c.l.b16 %v1240
    %v1256 = vunpack.c.l.b16 %v1241
    %v1257 = vunpack.c.l.b16 %v1242
    %v1258 = vunpack.c.l.b16 %v1243
    %v1259 = vpack.c.b16 %v1256, %v1255
    %v1260 = vpack.c.b16 %v1258, %v1257
    %v1264 = vsel %vm641, %v1250, 0
    %1266 = vmatprep.subr.bf16.mxu0 0
    %1267 = vmatpush1.bf16.msra.mxu0 %v1259
    %1268 = vmatprep.subr.bf16.mxu0 0
    %1269 = vmatpush1.bf16.msra.mxu0 %v1260
    %1270 = vmatprep.subr.bf16.mxu0 0
    %1271 = vmatpush1.bf16.msra.mxu0 0
    %1272 = vmatprep.subr.bf16.mxu0 0
    %1273 = vmatpush1.bf16.msra.mxu0 0
    %1274 = vmatprep.subr.bf16.mxu0 0
    %1275 = vmatpush1.bf16.msra.mxu0 0
    %1276 = vmatprep.subr.bf16.mxu0 0
    %1277 = vmatpush1.bf16.msra.mxu0 0
    %1278 = vmatprep.subr.bf16.mxu0 0
    %1279 = vmatpush1.bf16.msra.mxu0 0
    %1280 = vmatprep.subr.bf16.mxu0 0
    %1281 = vmatpush1.bf16.msra.mxu0 0
    %1282 = vmatprep.subr.bf16.mxu0 0
    %1283 = vmatpush1.bf16.msra.mxu0 0
    %1284 = vmatprep.subr.bf16.mxu0 0
    %1285 = vmatpush1.bf16.msra.mxu0 0
    %1286 = vmatprep.subr.bf16.mxu0 0
    %1287 = vmatpush1.bf16.msra.mxu0 0
    %1288 = vmatprep.subr.bf16.mxu0 0
    %1289 = vmatpush1.bf16.msra.mxu0 0
    %1290 = vmatprep.subr.bf16.mxu0 0
    %1291 = vmatpush1.bf16.msra.mxu0 0
    %1292 = vmatprep.subr.bf16.mxu0 0
    %1293 = vmatpush1.bf16.msra.mxu0 0
    %1294 = vmatprep.subr.bf16.mxu0 0
    %1295 = vmatpush1.bf16.msra.mxu0 0
    %1296 = vmatprep.subr.bf16.mxu0 0
    %1297 = vmatpush1.bf16.msra.mxu0 0
    %1298 = vmatprep.mubr.bf16.mxu0 0
    %1299 = vmatmul.mubr.bf16.gmra.mrb[0].mxu0 %v1264
    %v1300 = vpop.f32.mrb[0].mxu0
    %v1301 = vadd.f32 %v1248, %v1300
    %v1302 = vpop.f32.mrb[0].mxu0
    %v1303 = vpop.f32.mrb[0].mxu0
    %v1304 = vpop.f32.mrb[0].mxu0
    %1305 = vdwg.mxu0
    %1307 = vrot.lane.b32.xlu0 %v1301, 4
    %v1308 = vpop.permute.xlu0 %1307
    %vm1310 = vcmask 31744
    %v1311 = vsel %vm1310, %v752, %v1308
    %vm1312 = vcmask 58368
    %1313 = vst.msk [vmem:[#allocation3] sm:$0x3] %vm1312, %v1311
    // Predicated region
    $region22: #{ensemble_forward.1} parent=1 // pred_check
      _
    $region23: #{ensemble_forward.1} parent=1 // pred_check_branch
      %1315 = sbr.rel (0) target = $region25
    $region24: #{ensemble_forward.1} parent=1 // pred_region
      %s1317 = ssub.s32 32, 32
      %1318 = vsyncadd [#allocation4], %s1317
      %s1320 = sshll.u32 [#allocation3], 4
      %s1321 = int_to_ptr.vmem [resolvable:$true] %s1320
      %1323 = dma.vmem_to_hbm [thread:$0]  %s1321, 32, %s5, [#allocation4]
    $region25: #{ensemble_forward.1} parent=1 // pred_fallthru
      _
    // Predicated region
    $region26: #{ensemble_forward.1} parent=1 // pred_check
      _
    $region27: #{ensemble_forward.1} parent=1 // pred_check_branch
      %1325 = sbr.rel (0) target = $region29
    $region28: #{ensemble_forward.1} parent=1 // pred_region
      %1326 = dma.done [#allocation4], 32
    $region29: #{ensemble_forward.1} parent=1 // pred_fallthru
      _
    %1327 = vsyncpa [#allocation4], 1

</llo_original>
